<compile_context>
chip_gen: v5e
topology: v5e:2x2
jax: 0.10.0
libtpu: 0.0.40
codegen_flags: <defaults>
</compile_context>

<pallas_src>
import math

import numpy as np
import jax
import jax.numpy as jnp
from jax.experimental import pallas as pl
from jax.experimental.pallas import tpu as pltpu

_MIB = 1024 * 1024


# ----------------------------------------------------------------------------
# Host-side parameter setup (mirrors the torch .item()-driven kernel building)
# ----------------------------------------------------------------------------
def calculate_kernel_size(sigma):
    """Formula to calculate kernel size from sigma (matches the torch code)."""
    return int(2 * math.ceil(3 * sigma) + 1)


def calculate_gaussian_1d(sigma, kernel_size):
    """1D Gaussian kernel, identical construction to the torch code."""
    x = np.arange(-kernel_size // 2 + 1.0, kernel_size // 2 + 1.0,
                  dtype=np.float64)
    g = np.exp(-(x ** 2) / (2.0 * sigma ** 2))
    g /= g.sum()
    return g


def build_padded_1d_kernels(blur_sigmas, fwd_steps):
    """Per-sample 1-D Gaussian kernels, all zero-padded to the max size K."""
    sigmas = [float(blur_sigmas[int(i)]) for i in fwd_steps]
    ksizes = [calculate_kernel_size(s) for s in sigmas]
    K = max(ksizes)
    if K % 2 == 0:
        K += 1
    g1s = []
    for s, ks in zip(sigmas, ksizes):
        g = calculate_gaussian_1d(s, ks)
        p = (K - ks) // 2
        g1s.append(np.pad(g, (p, p)))
    return np.stack(g1s), K                      # (B, K) float64, K


def build_toeplitz(g1d, N):
    """Symmetric banded Toeplitz implementing 'same' zero-padded 1-D correlation."""
    _, K = g1d.shape
    pad = K // 2
    d = np.arange(N)[None, :] - np.arange(N)[:, None] + pad   # (N, N) tap index
    valid = (d >= 0) & (d < K)
    T = g1d[:, np.clip(d, 0, K - 1)] * valid[None].astype(np.float64)
    return T                                       # (B, N, N) float64


def build_kron(t_h, t_w):
    """Per-sample kron(T_h, T_w): whole 2-D 'same' blur as one (HW, HW) matrix."""
    B, H, _ = t_h.shape
    _, W, _ = t_w.shape
    return np.einsum("bik,bjl->bijkl", t_h, t_w).reshape(B, H * W, H * W)


# ----------------------------------------------------------------------------
# Pallas kernels
# ----------------------------------------------------------------------------
def _kron_blur_kernel(x_ref, m_ref, o_ref):
    # x_ref: (1, ct, HW) f32 | m_ref: (1, HW, HW) bf16 | o_ref: (1, ct, HW) f32
    x = x_ref[0].astype(jnp.bfloat16)                              # (ct, HW)
    y = jnp.dot(x, m_ref[0], preferred_element_type=jnp.float32)   # (ct, HW)
    o_ref[0] = y.astype(o_ref.dtype)


def _separable_blur_kernel(x_ref, th_ref, tw_ref, o_ref):
    # x_ref: (1, ct, H, W) f32 | th_ref: (1, H, H) bf16 | tw_ref: (1, W, W) bf16
    _, ct, H, W = x_ref.shape
    th = th_ref[0]
    tw = tw_ref[0]
    x = x_ref[0].astype(jnp.bfloat16)                              # (ct, H, W)
    # W pass: ONE channel-stacked MXU matmul (M = ct*H).
    z = jnp.dot(x.reshape(ct * H, W), tw, preferred_element_type=jnp.float32)
    z = z.reshape(ct, H, W).astype(jnp.bfloat16)
    # H pass: one (H, H) @ (H, W) MXU matmul per channel (lane dim = W).
    # Values die at each store -> bounded vreg pressure.
    for c in range(ct):
        yc = jnp.dot(th, z[c], preferred_element_type=jnp.float32)
        o_ref[0, c] = yc.astype(o_ref.dtype)


# ----------------------------------------------------------------------------
# Generation-aware tiling / VMEM budgeting
# ----------------------------------------------------------------------------
def _vmem_capacity_bytes():
    try:
        cap = int(getattr(pltpu.get_tpu_info(), "vmem_capacity_bytes", 0) or 0)
        if cap > 0:
            return cap
    except Exception:
        pass
    return 64 * _MIB                      # conservative default (v7x per-TC)


def _vmem_limit_bytes(capacity):
    # ~48 MiB on v7x (64 MiB VMEM), ~96 MiB on v5e/v6e (128 MiB VMEM).
    return int(min(max(capacity * 3 // 4, 32 * _MIB), 100 * _MIB))


def _pick_channel_tile(B, C, elems_per_chan, weight_block_bytes, budget_bytes,
                       max_ct=128, multiple_of=1):
    """Largest channel tile whose double-buffered blocks fit the VMEM budget."""
    per_chan = 2 * (4 + 4) * elems_per_chan      # f32 in + f32 out, 2 buffers
    avail = max(budget_bytes - 2 * weight_block_bytes, per_chan)
    ct = int(max(1, min(C, max_ct, avail // per_chan)))
    if ct < C and multiple_of > 1:
        # (8,128) rule on the flattened layout: split tiles must be sublane-aligned.
        ct = max(multiple_of, (ct // multiple_of) * multiple_of)
    # v7x has two TensorCores: keep at least 2 parallel grid steps if possible.
    if multiple_of == 1 and C > 1 and B * pl.cdiv(C, ct) < 2:
        ct = pl.cdiv(C, 2)
    return ct


# ----------------------------------------------------------------------------
# Wrapper: the module's forward pass
# ----------------------------------------------------------------------------
def gaussian_blur2(x, blur_sigmas, fwd_steps, *, force_separable=False):
    """Pallas equivalent of GaussianBlurLayer2.forward(x, fwd_steps).

    x: (B, C, H, W) float32.  fwd_steps must be concrete host integers — the
    torch module also requires host values (it calls .item() on sigmas).
    """
    B, C, H, W = x.shape
    assert len(fwd_steps) == B
    g1d, _K = build_padded_1d_kernels(blur_sigmas, fwd_steps)

    vmem_limit = _vmem_limit_bytes(_vmem_capacity_bytes())
    budget = int(vmem_limit * 0.7)

    use_kron = (W < 128) and (H * W <= 1024) and not force_separable

    if use_kron:
        # ---- small-image path: one fused lane-dense matmul per grid step ----
        HW = H * W
        t_h = build_toeplitz(g1d, H)
        t_w = build_toeplitz(g1d, W)
        m = jnp.asarray(build_kron(t_h, t_w).astype(np.float32),
                        dtype=jnp.bfloat16)                      # (B, HW, HW)
        wbytes = HW * HW * 2
        ct = _pick_channel_tile(B, C, HW, wbytes, budget, multiple_of=8)
        n_c = pl.cdiv(C, ct)
        Cp = n_c * ct
        x_flat = x.reshape(B, C, HW)
        if Cp != C:
            x_flat = jnp.pad(x_flat, ((0, 0), (0, Cp - C), (0, 0)))
        cost = pl.CostEstimate(flops=2 * B * Cp * HW * HW,
                               transcendentals=0,
                               bytes_accessed=2 * B * C * HW * 4 + B * wbytes)
        out_flat = pl.pallas_call(
            _kron_blur_kernel,
            out_shape=jax.ShapeDtypeStruct((B, Cp, HW), x.dtype),
            grid=(B, n_c),
            in_specs=[
                pl.BlockSpec((1, ct, HW), lambda b, c: (b, c, 0)),
                pl.BlockSpec((1, HW, HW), lambda b, c: (b, 0, 0)),
            ],
            out_specs=pl.BlockSpec((1, ct, HW), lambda b, c: (b, c, 0)),
            compiler_params=pltpu.CompilerParams(
                dimension_semantics=("parallel", "parallel"),
                vmem_limit_bytes=vmem_limit),
            cost_estimate=cost,
        )(x_flat, m)
        return out_flat[:, :C].reshape(B, C, H, W)

    # ---- larger images: separable two-pass Toeplitz path ----
    t_h = jnp.asarray(build_toeplitz(g1d, H).astype(np.float32),
                      dtype=jnp.bfloat16)                         # (B, H, H)
    t_w = jnp.asarray(build_toeplitz(g1d, W).astype(np.float32),
                      dtype=jnp.bfloat16)                         # (B, W, W)
    wbytes = (H * H + W * W) * 2
    ct = _pick_channel_tile(B, C, H * W, wbytes, budget)
    n_c = pl.cdiv(C, ct)
    Cp = n_c * ct
    xp = x if Cp == C else jnp.pad(x, ((0, 0), (0, Cp - C), (0, 0), (0, 0)))
    cost = pl.CostEstimate(flops=2 * B * Cp * H * W * (H + W),
                           transcendentals=0,
                           bytes_accessed=2 * B * C * H * W * 4 + B * wbytes)
    out = pl.pallas_call(
        _separable_blur_kernel,
        out_shape=jax.ShapeDtypeStruct((B, Cp, H, W), x.dtype),
        grid=(B, n_c),
        in_specs=[
            pl.BlockSpec((1, ct, H, W), lambda b, c: (b, c, 0, 0)),
            pl.BlockSpec((1, H, H), lambda b, c: (b, 0, 0)),
            pl.BlockSpec((1, W, W), lambda b, c: (b, 0, 0)),
        ],
        out_specs=pl.BlockSpec((1, ct, H, W), lambda b, c: (b, c, 0, 0)),
        compiler_params=pltpu.CompilerParams(
            dimension_semantics=("parallel", "parallel"),
            vmem_limit_bytes=vmem_limit),
        cost_estimate=cost,
    )(xp, t_h, t_w)
    return out[:, :C]


# ----------------------------------------------------------------------------
# Demo / correctness check
# ----------------------------------------------------------------------------
def _reference_blur(x_np, g1d, K):
    """NumPy reference: per-sample 2-D depthwise cross-correlation, 'same'
    zero padding, kernel built exactly as the torch module does."""
    B, C, H, W = x_np.shape
    pad = K // 2
    k2 = np.einsum("bi,bj->bij", g1d, g1d)
    k2 /= k2.sum(axis=(1, 2), keepdims=True)          # torch's 2-D renorm
    xp = np.pad(x_np.astype(np.float64),
                ((0, 0), (0, 0), (pad, pad), (pad, pad)))
    ref = np.zeros((B, C, H, W), np.float64)
    for b in range(B):
        for ki in range(K):
            for kj in range(K):
                ref[b] += k2[b, ki, kj] * xp[b, :, ki:ki + H, kj:kj + W]
    return ref


if __name__ == "__main__":
    B, C, H, W = 2, 4, 16, 16
    blur_sigmas = [0.5, 1.0, 1.5, 2.0]    # module "parameter" (deterministic)
    fwd_steps = [1, 3]                    # concrete host data (torch uses .item())

    key = jax.random.PRNGKey(0)
    x = jax.random.normal(key, (B, C, H, W), dtype=jnp.float32)

    g1d, K = build_padded_1d_kernels(blur_sigmas, fwd_steps)
    ref = _reference_blur(np.asarray(x), g1d, K)

    # Path 1: small-image fused kron matmul (lane-dense output).
    out_kron = jax.block_until_ready(gaussian_blur2(x, blur_sigmas, fwd_steps))
    # Path 2: separable Toeplitz path (the large-image path), forced here so
    # both code paths are exercised against the same reference.
    out_sep = jax.block_until_ready(
        gaussian_blur2(x, blur_sigmas, fwd_steps, force_separable=True))

    for out in (out_kron, out_sep):
        assert out.shape == (B, C, H, W) and out.dtype == jnp.float32
        # bf16 MXU operands with f32 accumulation -> relaxed tolerance.
        np.testing.assert_allclose(np.asarray(out, np.float64), ref,
                                   rtol=2e-2, atol=5e-2)
    print("KERNEL_OK")
</pallas_src>

<mosaic_0001>
module attributes {stable_mosaic.version = 11 : i64} {
  func.func @_kron_blur_kernel(%arg0: i32, %arg1: i32, %arg2: memref<1x4x256xf32, #tpu.memory_space<vmem>>, %arg3: memref<1x256x256xbf16, #tpu.memory_space<vmem>>, %arg4: memref<1x4x256xf32, #tpu.memory_space<vmem>>) attributes {dimension_semantics = [#tpu.dimension_semantics<parallel>, #tpu.dimension_semantics<parallel>], iteration_bounds = array<i64: 2, 1>, scalar_prefetch = 0 : i64, scratch_operands = 0 : i64, tpu.core_type = #tpu.core_type<tc>, window_params = [{transform_indices = @transform_0, window_bounds = array<i64: 1, 4, 256>}, {transform_indices = @transform_1, window_bounds = array<i64: 1, 256, 256>}, {transform_indices = @transform_2, window_bounds = array<i64: 1, 4, 256>}]} {
    %c0 = arith.constant 0 : index
    %c0_0 = arith.constant 0 : index
    %c0_1 = arith.constant 0 : index
    %0 = vector.load %arg2[%c0, %c0_0, %c0_1] : memref<1x4x256xf32, #tpu.memory_space<vmem>>, vector<1x4x256xf32>
    %1 = vector.shape_cast %0 : vector<1x4x256xf32> to vector<4x256xf32>
    %2 = arith.truncf %1 : vector<4x256xf32> to vector<4x256xbf16>
    %c0_2 = arith.constant 0 : index
    %c0_3 = arith.constant 0 : index
    %c0_4 = arith.constant 0 : index
    %3 = vector.load %arg3[%c0_2, %c0_3, %c0_4] : memref<1x256x256xbf16, #tpu.memory_space<vmem>>, vector<1x256x256xbf16>
    %4 = vector.shape_cast %3 : vector<1x256x256xbf16> to vector<256x256xbf16>
    %cst = arith.constant dense<0.000000e+00> : vector<4x256xf32>
    %5 = tpu.matmul %2, %4, %cst {dimension_numbers = #tpu.dot_dimension_numbers<[1], [0], [0], [1], [0, 0, 1, 1], [], []>} : vector<4x256xbf16>, vector<256x256xbf16>, vector<4x256xf32> -> vector<4x256xf32>
    %c0_5 = arith.constant 0 : index
    %c0_6 = arith.constant 0 : index
    %c0_7 = arith.constant 0 : index
    %6 = vector.load %arg4[%c0_5, %c0_6, %c0_7] : memref<1x4x256xf32, #tpu.memory_space<vmem>>, vector<1x4x256xf32>
    %7 = vector.shape_cast %6 : vector<1x4x256xf32> to vector<4x256xf32>
    %8 = vector.shape_cast %5 : vector<4x256xf32> to vector<1x4x256xf32>
    tpu.vector_store %arg4[%c0_5, %c0_6, %c0_7], %8 {strides = array<i32>} : memref<1x4x256xf32, #tpu.memory_space<vmem>>, vector<1x4x256xf32>,
    return
  }
  func.func @transform_0(%arg0: i32, %arg1: i32) -> (i32, i32, i32) {
    %c0_i32 = arith.constant 0 : i32
    %c0_i32_0 = arith.constant 0 : i32
    return %arg0, %arg1, %c0_i32 : i32, i32, i32
  }
  func.func @transform_1(%arg0: i32, %arg1: i32) -> (i32, i32, i32) {
    %c0_i32 = arith.constant 0 : i32
    %c0_i32_0 = arith.constant 0 : i32
    %c0_i32_1 = arith.constant 0 : i32
    return %arg0, %c0_i32, %c0_i32_0 : i32, i32, i32
  }
  func.func @transform_2(%arg0: i32, %arg1: i32) -> (i32, i32, i32) {
    %c0_i32 = arith.constant 0 : i32
    %c0_i32_0 = arith.constant 0 : i32
    return %arg0, %arg1, %c0_i32 : i32, i32, i32
  }
}

</mosaic_0001>

<llo_original>
// kernel: tpu_custom_call.1
$region0: #{tpu_custom_call.1}
  #allocation0 [shape = 'u32[]', space=smem, size = 0x4, offset = 0x4, fixed_abs, tag = 'smem constant byte address 0x4 - core index']
  #allocation1 [shape = 'u32[72,128]{1,0:T(1,128)}', space=vmem, size = 0x9000, scoped, tag = 'internal scratch']
  %s0 = inlined_call_operand.hbm [shape: f32[2,4,256], index: 0, kind: input, shape index: {}]
  %s1 = inlined_call_operand.hbm [shape: bf16[2,256,256], index: 1, kind: input, shape index: {}]
  %s2 = inlined_call_operand.hbm [shape: f32[2,4,256], index: 2, kind: output, shape index: {}]
  %s3 = sld [smem:[#allocation0]]
  $region49: #{tpu_custom_call.1} parent=0
    _
  %s5 = ssub.s32 1, %s3
  %s6 = scalar_select 0, %s5, %s3
  $region1: #{tpu_custom_call.1} parent=0
    #allocation2 [shape = 'u8[8192]{0}', space=vmem, size = 0x2000, scoped, tag = 'input window, operand 0']
    #allocation3 [shape = 's32[2]{0}', space=sflag, size = 0x8, scoped, tag = 'scoped memory for tpu_custom_call.1']
    #allocation4 [shape = 's32[2]{0}', space=sflag, size = 0x8, scoped, tag = 'scoped memory for tpu_custom_call.1']
    #allocation5 [shape = 'u8[262144]{0}', space=vmem, size = 0x40000, scoped, tag = 'input window, operand 1']
    #allocation6 [shape = 's32[2]{0}', space=sflag, size = 0x8, scoped, tag = 'scoped memory for tpu_custom_call.1']
    #allocation7 [shape = 'u8[8192]{0}', space=vmem, size = 0x2000, scoped, tag = 'output window, operand 0']
    %7 = vsyncpa [#allocation3], 0
    %s8 = scalar_lea.sflag [#allocation3], 1
    %9 = vsyncpa %s8, 0
    %10 = vsyncpa [#allocation6], 0
    %s11 = scalar_lea.sflag [#allocation6], 1
    %12 = vsyncpa %s11, 0
    %13 = vsyncpa [#allocation4], 0
    %s14 = scalar_lea.sflag [#allocation4], 1
    %15 = vsyncpa %s14, 0
    loop: start=0, step=1, limit=4
    $region2: #{tpu_custom_call.1} parent=1 // loop_pre_header
      _
    $region3: #{tpu_custom_call.1} parent=1 // loop_header
      %s17 = sphi 0, %s21
      %p18 = scmp.ge.s32.totalorder %s17, 4
      %s24 = sphi 0, %s36
      %s25 = sphi 0, %s32
      %s26 = sphi 0, %s24
      %s27 = sphi 0, %s25
      %s28 = sphi 0, %s26
      %s29 = sphi 0, %s27
      %s41 = sphi 0, %s43
      %s44 = sphi 0, %s41
      %s45 = sphi 0, %s44
      %s61 = sphi 0, %s45
      %s67 = sphi 0, %s69
      %s70 = sphi 0, %s67
      %s71 = sphi 0, %s70
      %s87 = sphi 0, %s71
      %s95 = sphi 0, %s97
      %s98 = sphi 0, %s95
      %s99 = sphi 0, %s98
      %s115 = sphi 0, %s99
    $region4: #{tpu_custom_call.1} parent=1 // loop_header_branch
      %20 = sbr.rel (%p18) target = $region8
    $region5: #{tpu_custom_call.1} parent=1 // loop_body
      %s22 = ssub.s32 %s17, 1
      %s23 = ssub.s32 %s17, 2
      %s30 = sadd.s32 1, %s25
      %p31 = scmp.ge.s32.totalorder %s30, 1
      %s32 = scalar_select %p31, 0, %s30
      %s33 = sadd.s32 1, %s24
      %s34 = scalar_select %p31, %s33, %s24
      %p35 = scmp.ge.s32.totalorder %s34, 2
      %s36 = scalar_select %p35, 0, %s34
      %s37 = ssub.s32 %s24, %s36
      %s38 = ssub.s32 %s25, %s32
      %s39 = sor.u32 %s37, %s38
      %p40 = scmp.eq.s32.totalorder %s39, 0
      %s42 = sadd.s32 %s41, 1
      %s43 = scalar_select %p40, %s41, %s42
      %p46 = pneg %p40
      %p47 = scmp.eq.s32.totalorder %s17, 1
      %p48 = por %p46, %p47
      %p49 = scmp.ne.s32.totalorder %s41, %s44
      %p50 = scmp.eq.s32.totalorder %s17, 0
      %p51 = por %p49, %p50
      %p52 = scmp.ne.s32.totalorder %s41, %s44
      %p53 = scmp.eq.s32.totalorder %s22, 1
      %p54 = por %p52, %p53
      %p55 = scmp.ne.s32.totalorder %s44, %s45
      %p56 = scmp.eq.s32.totalorder %s22, 0
      %p57 = por %p55, %p56
      %p58 = scmp.ne.s32.totalorder %s44, %s45
      %p59 = scmp.eq.s32.totalorder %s23, 1
      %p60 = por %p58, %p59
      %p62 = scmp.ne.s32.totalorder %s45, %s61
      %p63 = scmp.eq.s32.totalorder %s23, 0
      %p64 = por %p62, %p63
      %s65 = ssub.s32 %s24, %s36
      %p66 = scmp.eq.s32.totalorder %s65, 0
      %s68 = sadd.s32 %s67, 1
      %s69 = scalar_select %p66, %s67, %s68
      %p72 = pneg %p66
      %p73 = scmp.eq.s32.totalorder %s17, 1
      %p74 = por %p72, %p73
      %p75 = scmp.ne.s32.totalorder %s67, %s70
      %p76 = scmp.eq.s32.totalorder %s17, 0
      %p77 = por %p75, %p76
      %p78 = scmp.ne.s32.totalorder %s67, %s70
      %p79 = scmp.eq.s32.totalorder %s22, 1
      %p80 = por %p78, %p79
      %p81 = scmp.ne.s32.totalorder %s70, %s71
      %p82 = scmp.eq.s32.totalorder %s22, 0
      %p83 = por %p81, %p82
      %p84 = scmp.ne.s32.totalorder %s70, %s71
      %p85 = scmp.eq.s32.totalorder %s23, 1
      %p86 = por %p84, %p85
      %p88 = scmp.ne.s32.totalorder %s71, %s87
      %p89 = scmp.eq.s32.totalorder %s23, 0
      %p90 = por %p88, %p89
      %s91 = ssub.s32 %s24, %s36
      %s92 = ssub.s32 %s25, %s32
      %s93 = sor.u32 %s91, %s92
      %p94 = scmp.eq.s32.totalorder %s93, 0
      %s96 = sadd.s32 %s95, 1
      %s97 = scalar_select %p94, %s95, %s96
      %p100 = pneg %p94
      %p101 = scmp.eq.s32.totalorder %s17, 1
      %p102 = por %p100, %p101
      %p103 = scmp.ne.s32.totalorder %s95, %s98
      %p104 = scmp.eq.s32.totalorder %s17, 0
      %p105 = por %p103, %p104
      %p106 = scmp.ne.s32.totalorder %s95, %s98
      %p107 = scmp.eq.s32.totalorder %s22, 1
      %p108 = por %p106, %p107
      %p109 = scmp.ne.s32.totalorder %s98, %s99
      %p110 = scmp.eq.s32.totalorder %s22, 0
      %p111 = por %p109, %p110
      %p112 = scmp.ne.s32.totalorder %s98, %s99
      %p113 = scmp.eq.s32.totalorder %s23, 1
      %p114 = por %p112, %p113
      %p116 = scmp.ne.s32.totalorder %s99, %s115
      %p117 = scmp.eq.s32.totalorder %s23, 0
      %p118 = por %p116, %p117
      %p119 = scmp.le.s32.totalorder 1, %s17
      %p120 = scmp.lt.s32.totalorder %s17, 3
      %p121 = pnand %p119, %p120
      %p122 = pneg %p121
      // Predicated region
      $region9: #{tpu_custom_call.1} parent=5 // pred_check
        _
      $region10: #{tpu_custom_call.1} parent=5 // pred_check_branch
        %124 = sbr.rel (%p121) target = $region12
      $region11: #{tpu_custom_call.1} parent=5 // pred_region
        %s125 = ssub.s32 %s17, 1
      $region12: #{tpu_custom_call.1} parent=5 // pred_fallthru
        _
      %p126 = scmp.lt.s32.totalorder %s17, 2
      // Predicated region
      $region13: #{tpu_custom_call.1} parent=5 // pred_check
        %p127 = pneg %p126
      $region14: #{tpu_custom_call.1} parent=5 // pred_check_branch
        %129 = sbr.rel (%p127) target = $region16
      $region15: #{tpu_custom_call.1} parent=5 // pred_region
        // Predicated region
        $region17: #{tpu_custom_call.1} parent=15 // pred_check
          %p130 = pneg %p51
        $region18: #{tpu_custom_call.1} parent=15 // pred_check_branch
          %132 = sbr.rel (%p130) target = $region20
        $region19: #{tpu_custom_call.1} parent=15 // pred_region
          %s133 = sand.u32 %s41, 1
          %s134 = scalar_lea.sflag [#allocation3], %s133
          %s135 = sand.u32 %s41, 1
          %s136 = smul.addr %s135, 8
          %s137 = scalar_lea.vmem [#allocation2], %s136
          %139 = vsyncadd %s134, 0
          %s140 = smul.addr %s25, 2
          %s141 = smul.addr %s24, 2
          %s142 = sadd.s32 %s140, %s141
          %s143 = smul.addr %s142, 4
          %s144 = scalar_lea.hbm %s0, %s143
          %s146 = sshll.u32 %s144, 4
          %s147 = int_to_ptr.hbm [resolvable:$true] %s146
          %s148 = sshll.u32 %s137, 4
          %s149 = int_to_ptr.vmem [resolvable:$true] %s148
          %151 = dma.hbm_to_vmem [thread:$0]  %s147, 128, %s149, %s134
        $region20: #{tpu_custom_call.1} parent=15 // pred_fallthru
          _
        // Predicated region
        $region21: #{tpu_custom_call.1} parent=15 // pred_check
          %p152 = pneg %p77
        $region22: #{tpu_custom_call.1} parent=15 // pred_check_branch
          %154 = sbr.rel (%p152) target = $region24
        $region23: #{tpu_custom_call.1} parent=15 // pred_region
          %s155 = sand.u32 %s67, 1
          %s156 = scalar_lea.sflag [#allocation6], %s155
          %s157 = sand.u32 %s67, 1
          %s158 = smul.addr %s157, 256
          %s159 = scalar_lea.vmem [#allocation5], %s158
          %161 = vsyncadd %s156, 0
          %s162 = smul.addr %s24, 64
          %s163 = smul.addr %s162, 4
          %s164 = scalar_lea.hbm %s1, %s163
          %s165 = sshll.u32 %s164, 4
          %s166 = int_to_ptr.hbm [resolvable:$true] %s165
          %s167 = sshll.u32 %s159, 4
          %s168 = int_to_ptr.vmem [resolvable:$true] %s167
          %173 = dma.hbm_to_vmem [thread:$0]  %s166, 4096, %s168, %s156, 128, 128, 8
        $region24: #{tpu_custom_call.1} parent=15 // pred_fallthru
          _
      $region16: #{tpu_custom_call.1} parent=5 // pred_fallthru
        _
      %p174 = scmp.le.s32.totalorder 1, %s17
      %p175 = scmp.lt.s32.totalorder %s17, 3
      %p176 = pnand %p174, %p175
      %p177 = pneg %p176
      // Predicated region
      $region25: #{tpu_custom_call.1} parent=5 // pred_check
        _
      $region26: #{tpu_custom_call.1} parent=5 // pred_check_branch
        %179 = sbr.rel (%p176) target = $region28
      $region27: #{tpu_custom_call.1} parent=5 // pred_region
        %s180 = ssub.s32 %s17, 1
        %s181 = sand.u32 %s44, 1
        %s182 = scalar_lea.sflag [#allocation3], %s181
        %s183 = sand.u32 %s44, 1
        %s184 = smul.addr %s183, 8
        %s185 = scalar_lea.vmem [#allocation2], %s184
        // Predicated region
        $region29: #{tpu_custom_call.1} parent=27 // pred_check
          %p186 = pneg %p57
        $region30: #{tpu_custom_call.1} parent=27 // pred_check_branch
          %188 = sbr.rel (%p186) target = $region32
        $region31: #{tpu_custom_call.1} parent=27 // pred_region
          %190 = dma.done %s182, 128
        $region32: #{tpu_custom_call.1} parent=27 // pred_fallthru
          _
        %s191 = sand.u32 %s70, 1
        %s192 = scalar_lea.sflag [#allocation6], %s191
        %s193 = sand.u32 %s70, 1
        %s194 = smul.addr %s193, 256
        %s195 = scalar_lea.vmem [#allocation5], %s194
        // Predicated region
        $region33: #{tpu_custom_call.1} parent=27 // pred_check
          %p196 = pneg %p83
        $region34: #{tpu_custom_call.1} parent=27 // pred_check_branch
          %198 = sbr.rel (%p196) target = $region36
        $region35: #{tpu_custom_call.1} parent=27 // pred_region
          %200 = dma.done %s192, 4096
        $region36: #{tpu_custom_call.1} parent=27 // pred_fallthru
          _
        %s201 = sand.u32 %s44, 1
        %s202 = scalar_lea.sflag [#allocation3], %s201
        %s203 = sand.u32 %s44, 1
        %s204 = smul.addr %s203, 8
        %s205 = scalar_lea.vmem [#allocation2], %s204
        %p206 = pneg %p57
        %p207 = pneg %p54
        %s208 = sand.u32 %s70, 1
        %s209 = scalar_lea.sflag [#allocation6], %s208
        %s210 = sand.u32 %s70, 1
        %s211 = smul.addr %s210, 256
        %s212 = scalar_lea.vmem [#allocation5], %s211
        %p213 = pneg %p83
        %p214 = pneg %p80
        %p215 = pneg %p111
        %p216 = pneg %p108
        %s217 = sand.u32 %s98, 1
        %s218 = scalar_lea.sflag [#allocation4], %s217
        %s219 = sand.u32 %s98, 1
        %s220 = smul.addr %s219, 8
        %s221 = scalar_lea.vmem [#allocation7], %s220
        %v222 = vld [vmem:[%s185] sm:$0xff]
        %224 = vst [vmem:[#allocation1] ss:$2 sm:$0xff] %v222
        %v225 = vld.sshfl [vmem:[#allocation1] sm:$0xff pattern:$0x75316420]
        %v226 = vld.sshfl [vmem:[#allocation1 + $0x8] sm:$0xff pattern:$0x75316420]
        %v229 = vpack.c.bf16 %v225, %v225
        %v230 = vpack.c.bf16 %v226, %v226
        %v231 = vld [vmem:[%s195] sm:$0xff]
        %v232 = vld [vmem:[%s195 + $0x8] sm:$0xff]
        %v233 = vld [vmem:[%s195 + $0x10] sm:$0xff]
        %v234 = vld [vmem:[%s195 + $0x18] sm:$0xff]
        %v235 = vld [vmem:[%s195 + $0x20] sm:$0xff]
        %v236 = vld [vmem:[%s195 + $0x28] sm:$0xff]
        %v237 = vld [vmem:[%s195 + $0x30] sm:$0xff]
        %v238 = vld [vmem:[%s195 + $0x38] sm:$0xff]
        %v239 = vld [vmem:[%s195 + $0x40] sm:$0xff]
        %v240 = vld [vmem:[%s195 + $0x48] sm:$0xff]
        %v241 = vld [vmem:[%s195 + $0x50] sm:$0xff]
        %v242 = vld [vmem:[%s195 + $0x58] sm:$0xff]
        %v243 = vld [vmem:[%s195 + $0x60] sm:$0xff]
        %v244 = vld [vmem:[%s195 + $0x68] sm:$0xff]
        %v245 = vld [vmem:[%s195 + $0x70] sm:$0xff]
        %v246 = vld [vmem:[%s195 + $0x78] sm:$0xff]
        %v247 = vld [vmem:[%s195 + $0x80] sm:$0xff]
        %v248 = vld [vmem:[%s195 + $0x88] sm:$0xff]
        %v249 = vld [vmem:[%s195 + $0x90] sm:$0xff]
        %v250 = vld [vmem:[%s195 + $0x98] sm:$0xff]
        %v251 = vld [vmem:[%s195 + $0xa0] sm:$0xff]
        %v252 = vld [vmem:[%s195 + $0xa8] sm:$0xff]
        %v253 = vld [vmem:[%s195 + $0xb0] sm:$0xff]
        %v254 = vld [vmem:[%s195 + $0xb8] sm:$0xff]
        %v255 = vld [vmem:[%s195 + $0xc0] sm:$0xff]
        %v256 = vld [vmem:[%s195 + $0xc8] sm:$0xff]
        %v257 = vld [vmem:[%s195 + $0xd0] sm:$0xff]
        %v258 = vld [vmem:[%s195 + $0xd8] sm:$0xff]
        %v259 = vld [vmem:[%s195 + $0xe0] sm:$0xff]
        %v260 = vld [vmem:[%s195 + $0xe8] sm:$0xff]
        %v261 = vld [vmem:[%s195 + $0xf0] sm:$0xff]
        %v262 = vld [vmem:[%s195 + $0xf8] sm:$0xff]
        %v295 = vunpack.c.l.b16 %v231
        %v296 = vunpack.c.h.b16 %v231
        %v297 = vunpack.c.l.b16 %v232
        %v298 = vunpack.c.h.b16 %v232
        %v299 = vunpack.c.l.b16 %v233
        %v300 = vunpack.c.h.b16 %v233
        %v301 = vunpack.c.l.b16 %v234
        %v302 = vunpack.c.h.b16 %v234
        %v303 = vunpack.c.l.b16 %v235
        %v304 = vunpack.c.h.b16 %v235
        %v305 = vunpack.c.l.b16 %v236
        %v306 = vunpack.c.h.b16 %v236
        %v307 = vunpack.c.l.b16 %v237
        %v308 = vunpack.c.h.b16 %v237
        %v309 = vunpack.c.l.b16 %v238
        %v310 = vunpack.c.h.b16 %v238
        %v311 = vunpack.c.l.b16 %v239
        %v312 = vunpack.c.h.b16 %v239
        %v313 = vunpack.c.l.b16 %v240
        %v314 = vunpack.c.h.b16 %v240
        %v315 = vunpack.c.l.b16 %v241
        %v316 = vunpack.c.h.b16 %v241
        %v317 = vunpack.c.l.b16 %v242
        %v318 = vunpack.c.h.b16 %v242
        %v319 = vunpack.c.l.b16 %v243
        %v320 = vunpack.c.h.b16 %v243
        %v321 = vunpack.c.l.b16 %v244
        %v322 = vunpack.c.h.b16 %v244
        %v323 = vunpack.c.l.b16 %v245
        %v324 = vunpack.c.h.b16 %v245
        %v325 = vunpack.c.l.b16 %v246
        %v326 = vunpack.c.h.b16 %v246
        %v327 = vunpack.c.l.b16 %v247
        %v328 = vunpack.c.h.b16 %v247
        %v329 = vunpack.c.l.b16 %v248
        %v330 = vunpack.c.h.b16 %v248
        %v331 = vunpack.c.l.b16 %v249
        %v332 = vunpack.c.h.b16 %v249
        %v333 = vunpack.c.l.b16 %v250
        %v334 = vunpack.c.h.b16 %v250
        %v335 = vunpack.c.l.b16 %v251
        %v336 = vunpack.c.h.b16 %v251
        %v337 = vunpack.c.l.b16 %v252
        %v338 = vunpack.c.h.b16 %v252
        %v339 = vunpack.c.l.b16 %v253
        %v340 = vunpack.c.h.b16 %v253
        %v341 = vunpack.c.l.b16 %v254
        %v342 = vunpack.c.h.b16 %v254
        %v343 = vunpack.c.l.b16 %v255
        %v344 = vunpack.c.h.b16 %v255
        %v345 = vunpack.c.l.b16 %v256
        %v346 = vunpack.c.h.b16 %v256
        %v347 = vunpack.c.l.b16 %v257
        %v348 = vunpack.c.h.b16 %v257
        %v349 = vunpack.c.l.b16 %v258
        %v350 = vunpack.c.h.b16 %v258
        %v351 = vunpack.c.l.b16 %v259
        %v352 = vunpack.c.h.b16 %v259
        %v353 = vunpack.c.l.b16 %v260
        %v354 = vunpack.c.h.b16 %v260
        %v355 = vunpack.c.l.b16 %v261
        %v356 = vunpack.c.h.b16 %v261
        %v357 = vunpack.c.l.b16 %v262
        %v358 = vunpack.c.h.b16 %v262
        %v359 = vpack.c.b16 %v297, %v295
        %v360 = vpack.c.b16 %v298, %v296
        %v361 = vpack.c.b16 %v301, %v299
        %v362 = vpack.c.b16 %v302, %v300
        %v363 = vpack.c.b16 %v305, %v303
        %v364 = vpack.c.b16 %v306, %v304
        %v365 = vpack.c.b16 %v309, %v307
        %v366 = vpack.c.b16 %v310, %v308
        %v367 = vpack.c.b16 %v313, %v311
        %v368 = vpack.c.b16 %v314, %v312
        %v369 = vpack.c.b16 %v317, %v315
        %v370 = vpack.c.b16 %v318, %v316
        %v371 = vpack.c.b16 %v321, %v319
        %v372 = vpack.c.b16 %v322, %v320
        %v373 = vpack.c.b16 %v325, %v323
        %v374 = vpack.c.b16 %v326, %v324
        %v375 = vpack.c.b16 %v329, %v327
        %v376 = vpack.c.b16 %v330, %v328
        %v377 = vpack.c.b16 %v333, %v331
        %v378 = vpack.c.b16 %v334, %v332
        %v379 = vpack.c.b16 %v337, %v335
        %v380 = vpack.c.b16 %v338, %v336
        %v381 = vpack.c.b16 %v341, %v339
        %v382 = vpack.c.b16 %v342, %v340
        %v383 = vpack.c.b16 %v345, %v343
        %v384 = vpack.c.b16 %v346, %v344
        %v385 = vpack.c.b16 %v349, %v347
        %v386 = vpack.c.b16 %v350, %v348
        %v387 = vpack.c.b16 %v353, %v351
        %v388 = vpack.c.b16 %v354, %v352
        %v389 = vpack.c.b16 %v357, %v355
        %v390 = vpack.c.b16 %v358, %v356
        %423 = vmatpush.bf16.msra.mxu0 %v373
        %424 = vmatpush.bf16.msra.mxu0 %v371
        %425 = vmatpush.bf16.msra.mxu0 %v369
        %426 = vmatpush.bf16.msra.mxu0 %v367
        %427 = vmatpush.bf16.msra.mxu0 %v365
        %428 = vmatpush.bf16.msra.mxu0 %v363
        %429 = vmatpush.bf16.msra.mxu0 %v361
        %430 = vmatpush.bf16.msra.mxu0 %v359
        %431 = vmatmul.bf16.gmra.mxu0 %v229
        %v432 = vpop.f32.mrf.mxu0
        %v433 = vadd.f32 0.0, %v432
        %v434 = vpop.f32.mrf.mxu0
        %435 = vdwg.mxu0
        %436 = vmatpush.bf16.msra.mxu0 %v389
        %437 = vmatpush.bf16.msra.mxu0 %v387
        %438 = vmatpush.bf16.msra.mxu0 %v385
        %439 = vmatpush.bf16.msra.mxu0 %v383
        %440 = vmatpush.bf16.msra.mxu0 %v381
        %441 = vmatpush.bf16.msra.mxu0 %v379
        %442 = vmatpush.bf16.msra.mxu0 %v377
        %443 = vmatpush.bf16.msra.mxu0 %v375
        %444 = vmatmul.bf16.gmra.mxu0 %v230
        %v445 = vpop.f32.mrf.mxu0
        %v446 = vadd.f32 %v433, %v445
        %v447 = vpop.f32.mrf.mxu0
        %448 = vdwg.mxu0
        %449 = vmatpush.bf16.msra.mxu0 %v374
        %450 = vmatpush.bf16.msra.mxu0 %v372
        %451 = vmatpush.bf16.msra.mxu0 %v370
        %452 = vmatpush.bf16.msra.mxu0 %v368
        %453 = vmatpush.bf16.msra.mxu0 %v366
        %454 = vmatpush.bf16.msra.mxu0 %v364
        %455 = vmatpush.bf16.msra.mxu0 %v362
        %456 = vmatpush.bf16.msra.mxu0 %v360
        %457 = vmatmul.bf16.gmra.mxu0 %v229
        %v458 = vpop.f32.mrf.mxu0
        %v459 = vadd.f32 0.0, %v458
        %v460 = vpop.f32.mrf.mxu0
        %461 = vdwg.mxu0
        %462 = vmatpush.bf16.msra.mxu0 %v390
        %463 = vmatpush.bf16.msra.mxu0 %v388
        %464 = vmatpush.bf16.msra.mxu0 %v386
        %465 = vmatpush.bf16.msra.mxu0 %v384
        %466 = vmatpush.bf16.msra.mxu0 %v382
        %467 = vmatpush.bf16.msra.mxu0 %v380
        %468 = vmatpush.bf16.msra.mxu0 %v378
        %469 = vmatpush.bf16.msra.mxu0 %v376
        %470 = vmatmul.bf16.gmra.mxu0 %v230
        %v471 = vpop.f32.mrf.mxu0
        %v472 = vadd.f32 %v459, %v471
        %v473 = vpop.f32.mrf.mxu0
        %474 = vdwg.mxu0
        %v477 = vrot.slane %v472, 4
        %vm478 = vcmask 1043456
        %v479 = vsel %vm478, %v446, %v477
        %481 = vst [vmem:[%s221] sm:$0xff] %v479
        %s482 = sand.u32 %s98, 1
        %s483 = scalar_lea.sflag [#allocation4], %s482
        %s484 = sand.u32 %s98, 1
        %s485 = smul.addr %s484, 8
        %s486 = scalar_lea.vmem [#allocation7], %s485
        // Predicated region
        $region37: #{tpu_custom_call.1} parent=27 // pred_check
          %p487 = pneg %p108
        $region38: #{tpu_custom_call.1} parent=27 // pred_check_branch
          %489 = sbr.rel (%p487) target = $region40
        $region39: #{tpu_custom_call.1} parent=27 // pred_region
          %491 = vsyncadd %s483, 0
          %s492 = smul.addr %s27, 2
          %s493 = smul.addr %s26, 2
          %s494 = sadd.s32 %s492, %s493
          %s495 = smul.addr %s494, 4
          %s496 = scalar_lea.hbm %s2, %s495
          %s498 = sshll.u32 %s486, 4
          %s499 = int_to_ptr.vmem [resolvable:$true] %s498
          %s500 = sshll.u32 %s496, 4
          %s501 = int_to_ptr.hbm [resolvable:$true] %s500
          %503 = dma.vmem_to_hbm [thread:$0]  %s499, 128, %s501, %s483
        $region40: #{tpu_custom_call.1} parent=27 // pred_fallthru
          _
      $region28: #{tpu_custom_call.1} parent=5 // pred_fallthru
        _
      %p504 = scmp.le.s32.totalorder 2, %s17
      // Predicated region
      $region41: #{tpu_custom_call.1} parent=5 // pred_check
        %p505 = pneg %p504
      $region42: #{tpu_custom_call.1} parent=5 // pred_check_branch
        %507 = sbr.rel (%p505) target = $region44
      $region43: #{tpu_custom_call.1} parent=5 // pred_region
        %s508 = ssub.s32 %s17, 2
        // Predicated region
        $region45: #{tpu_custom_call.1} parent=43 // pred_check
          %p509 = pneg %p114
        $region46: #{tpu_custom_call.1} parent=43 // pred_check_branch
          %511 = sbr.rel (%p509) target = $region48
        $region47: #{tpu_custom_call.1} parent=43 // pred_region
          %s512 = sand.u32 %s99, 1
          %s513 = scalar_lea.sflag [#allocation4], %s512
          %s514 = sand.u32 %s99, 1
          %s515 = smul.addr %s514, 8
          %s516 = scalar_lea.vmem [#allocation7], %s515
          %518 = dma.done %s513, 128
        $region48: #{tpu_custom_call.1} parent=43 // pred_fallthru
          _
      $region44: #{tpu_custom_call.1} parent=5 // pred_fallthru
        _
    $region6: #{tpu_custom_call.1} parent=1 // loop_footer
      %s21 = sadd.s32 1, %s17
    $region7: #{tpu_custom_call.1} parent=1 // loop_footer_branch
      %16 = sbr.rel target = $region3
    $region8: #{tpu_custom_call.1} parent=1 // loop_exit
      _
    %519 = vsyncpa [#allocation3], 1
    %s520 = scalar_lea.sflag [#allocation3], 1
    %521 = vsyncpa %s520, 1
    %522 = vsyncpa [#allocation6], 1
    %s523 = scalar_lea.sflag [#allocation6], 1
    %524 = vsyncpa %s523, 1
    %525 = vsyncpa [#allocation4], 1
    %s526 = scalar_lea.sflag [#allocation4], 1
    %527 = vsyncpa %s526, 1

</llo_original>
